<compile_context>
chip_gen: v6e
topology: v6e:2x2x1
jax: 0.10.0
libtpu: 0.0.40
codegen_flags: <defaults>
</compile_context>

<pallas_src>
from functools import partial

import jax
import jax.numpy as jnp
from jax import lax
from jax.experimental import pallas as pl
from jax.experimental.pallas import tpu as pltpu


def autopad(k, p=None):
    if p is None:
        p = k // 2 if isinstance(k, int) else [x // 2 for x in k]
    return p


def _pick_row_tile(h_out, dtype):
    """Output-row tile: sublane-quantum multiple dividing h_out; prefer >=2 tiles."""
    itemsize = jnp.dtype(dtype).itemsize
    mult = max(8, 32 // itemsize)            # 8 (f32), 16 (bf16), 32 (int8)
    cands = (8 * mult, 4 * mult, 2 * mult, mult)
    for cand in cands:                       # prefer >=2 row tiles (multi-TC sharding)
        if cand <= h_out and h_out % cand == 0 and h_out // cand >= 2:
            return cand
    for cand in cands:
        if cand <= h_out and h_out % cand == 0:
            return cand
    return h_out                             # whole-extent block is always legal


def _vmem_limit_bytes():
    """~Half of this generation's physical VMEM, capped; safe fallback."""
    try:
        cap = int(pltpu.get_tpu_info().vmem_capacity_bytes)
        return max(16 * 1024 * 1024, min(cap // 2, 96 * 1024 * 1024))
    except Exception:
        return 32 * 1024 * 1024


def _conv_bn_act_kernel(x_ref, w_ref, sb_ref, o_ref, *scratch,
                        k, s, p, th, w_out, h_in, w_in, apply_act):
    # x_ref:  (1, C1, H, W)        unpadded input image (one batch element)
    # w_ref:  (C2, k*k*C1)         conv weight, all taps packed on the K dim
    # sb_ref: (C2, 2)              [:,0] = BN scale, [:,1] = BN bias (folded, f32)
    # o_ref:  (1, C2, TH, W_out)
    # scratch (only if p > 0): xpad (C1, (TH-1)*s + k, W + 2p) padded row slab
    c1 = x_ref.shape[1]

    # First padded input row covered by this output-row tile.
    tile0 = pl.multiple_of(pl.program_id(1) * (th * s), th * s)

    if p > 0:
        xpad_ref, = scratch
        th_in = xpad_ref.shape[1]            # (th-1)*s + k
        row0 = tile0 - p                     # first *unpadded* source row (may be < 0)

        # Zero fill covers top/bottom halo rows and left/right pad columns.
        xpad_ref[...] = jnp.zeros_like(xpad_ref)

        def copy_row(rr, carry):
            src = row0 + rr

            @pl.when(jnp.logical_and(src >= 0, src < h_in))
            def _():
                xpad_ref[:, pl.ds(rr, 1), pl.ds(p, w_in)] = \
                    x_ref[0, :, pl.ds(src, 1), :]
            return carry

        lax.fori_loop(0, th_in, copy_row, 0)

        def load_row(r, kh):                 # -> (C1, W + 2p)
            return xpad_ref[:, pl.ds(r * s + kh, 1), :][:, 0, :]
    else:
        def load_row(r, kh):                 # p == 0: rows are always in-bounds
            return x_ref[0, :, pl.ds(tile0 + r * s + kh, 1), :][:, 0, :]

    def row_body(r, carry):
        # im2col patch for ONE output row: (k*k*C1, W_out), taps on the K dim.
        taps = []
        for kh in range(k):
            xr = load_row(r, kh)                                   # (C1, Wp)
            for kw in range(k):
                if s == 1:
                    taps.append(lax.slice(xr, (0, kw), (c1, kw + w_out)))
                else:
                    taps.append(lax.slice(xr, (0, kw),
                                          (c1, kw + (w_out - 1) * s + 1),
                                          (1, s)))
        patch = jnp.concatenate(taps, axis=0) if len(taps) > 1 else taps[0]

        # One big MXU matmul per output row (K = k*k*C1), fused BN + SiLU.
        y = jnp.dot(w_ref[...], patch,
                    preferred_element_type=jnp.float32)            # (C2, W_out)
        y = y * sb_ref[:, 0:1] + sb_ref[:, 1:2]
        if apply_act:
            y = y * (1.0 / (1.0 + jnp.exp(-y)))                    # SiLU (exp on EUP)
        o_ref[0, :, pl.ds(r, 1), :] = y[:, None, :].astype(o_ref.dtype)
        return carry

    lax.fori_loop(0, th, row_body, 0)


def conv_bn_silu(x, weight, gamma, beta, running_mean, running_var, *,
                 stride=1, padding=None, groups=1, eps=1e-5, act=True):
    """Fused Conv2d(bias=False) + BatchNorm2d (eval) + SiLU.  NCHW in / NCHW out."""
    if groups != 1:
        # TODO(synk): grouped / depthwise conv not implemented in the Pallas kernel.
        raise NotImplementedError("groups != 1 not supported")

    b, c1, h, w = x.shape
    c2, c1w, kh_, kw_ = weight.shape
    assert c1w == c1 and kh_ == kw_, "expect square kernel matching in-channels"
    k = int(kh_)
    s = int(stride)
    p = int(autopad(k, padding))

    h_out = (h + 2 * p - k) // s + 1
    w_out = (w + 2 * p - k) // s + 1

    # Fold BatchNorm (eval mode) into per-output-channel scale / bias.
    scale = (gamma.astype(jnp.float32) /
             jnp.sqrt(running_var.astype(jnp.float32) + eps))
    bias = beta.astype(jnp.float32) - running_mean.astype(jnp.float32) * scale
    sb = jnp.stack([scale, bias], axis=1)                          # (C2, 2)

    # (C2,C1,kh,kw) -> (C2, kh,kw,C1) -> (C2, k*k*C1): all taps on the K dim,
    # matching the in-kernel patch ordering (kh-major, kw, then c1).
    w_packed = jnp.transpose(weight.astype(x.dtype),
                             (0, 2, 3, 1)).reshape(c2, k * k * c1)

    th = _pick_row_tile(h_out, x.dtype)
    grid = (b, h_out // th)

    scratch_shapes = []
    if p > 0:
        th_in = (th - 1) * s + k
        scratch_shapes.append(pltpu.VMEM((c1, th_in, w + 2 * p), x.dtype))

    kernel = partial(_conv_bn_act_kernel, k=k, s=s, p=p, th=th, w_out=w_out,
                     h_in=h, w_in=w, apply_act=bool(act))

    return pl.pallas_call(
        kernel,
        out_shape=jax.ShapeDtypeStruct((b, c2, h_out, w_out), x.dtype),
        grid_spec=pltpu.PrefetchScalarGridSpec(
            num_scalar_prefetch=0,
            grid=grid,
            in_specs=[
                # Unpadded image: indexed only by batch -> fetched once per batch
                # and reused across all row tiles of that batch.
                pl.BlockSpec((1, c1, h, w), lambda bi, ti: (bi, 0, 0, 0)),
                pl.BlockSpec((c2, k * k * c1), lambda bi, ti: (0, 0)),
                pl.BlockSpec((c2, 2), lambda bi, ti: (0, 0)),
            ],
            out_specs=pl.BlockSpec((1, c2, th, w_out),
                                   lambda bi, ti: (bi, 0, ti, 0)),
            scratch_shapes=scratch_shapes,
        ),
        compiler_params=pltpu.CompilerParams(
            dimension_semantics=("parallel", "parallel"),
            vmem_limit_bytes=_vmem_limit_bytes(),
        ),
    )(x, w_packed, sb)


def conv_bn_silu_ref(x, weight, gamma, beta, running_mean, running_var,
                     *, stride=1, padding=None, groups=1, eps=1e-5, act=True):
    """Pure-JAX reference matching the PyTorch Conv module (eval-mode BN)."""
    k = weight.shape[2]
    p = int(autopad(int(k), padding))
    y = lax.conv_general_dilated(
        x.astype(jnp.float32), weight.astype(jnp.float32),
        window_strides=(stride, stride), padding=[(p, p), (p, p)],
        dimension_numbers=("NCHW", "OIHW", "NCHW"),
        feature_group_count=groups)
    scale = gamma / jnp.sqrt(running_var + eps)
    bias = beta - running_mean * scale
    y = y * scale[None, :, None, None] + bias[None, :, None, None]
    if act:
        y = y * (1.0 / (1.0 + jnp.exp(-y)))
    return y.astype(x.dtype)


if __name__ == "__main__":
    key = jax.random.PRNGKey(0)
    ks = jax.random.split(key, 16)

    B, C1, H, W = 2, 4, 16, 16
    x = jax.random.normal(ks[0], (B, C1, H, W), dtype=jnp.float32)

    def make_bn(c, k1, k2, k3, k4):
        g = 1.0 + 0.1 * jax.random.normal(k1, (c,), dtype=jnp.float32)
        bt = 0.1 * jax.random.normal(k2, (c,), dtype=jnp.float32)
        m = 0.1 * jax.random.normal(k3, (c,), dtype=jnp.float32)
        v = jax.random.uniform(k4, (c,), dtype=jnp.float32, minval=0.5, maxval=1.5)
        return g, bt, m, v

    # --- Conv(c1=4, c2=8, k=3, s=1): typical YOLO conv block ---
    C2 = 8
    w3 = 0.1 * jax.random.normal(ks[1], (C2, C1, 3, 3), dtype=jnp.float32)
    g3, b3, m3, v3 = make_bn(C2, ks[2], ks[3], ks[4], ks[5])
    out3 = jax.block_until_ready(conv_bn_silu(x, w3, g3, b3, m3, v3, stride=1))
    ref3 = conv_bn_silu_ref(x, w3, g3, b3, m3, v3, stride=1)
    assert out3.shape == (B, C2, H, W), out3.shape
    assert out3.dtype == x.dtype
    assert jnp.allclose(out3, ref3, atol=1e-4, rtol=1e-4), \
        float(jnp.max(jnp.abs(out3 - ref3)))

    # --- Conv(c1=4, c2=16, k=1, s=1): the module's defaults (pointwise conv) ---
    C2b = 16
    w1 = 0.1 * jax.random.normal(ks[6], (C2b, C1, 1, 1), dtype=jnp.float32)
    g1, b1, m1, v1 = make_bn(C2b, ks[7], ks[8], ks[9], ks[10])
    out1 = jax.block_until_ready(conv_bn_silu(x, w1, g1, b1, m1, v1, stride=1))
    ref1 = conv_bn_silu_ref(x, w1, g1, b1, m1, v1, stride=1)
    assert out1.shape == (B, C2b, H, W), out1.shape
    assert out1.dtype == x.dtype
    assert jnp.allclose(out1, ref1, atol=1e-4, rtol=1e-4), \
        float(jnp.max(jnp.abs(out1 - ref1)))

    # --- Conv(c1=4, c2=8, k=3, s=2): strided downsample conv ---
    C2c = 8
    w2 = 0.1 * jax.random.normal(ks[11], (C2c, C1, 3, 3), dtype=jnp.float32)
    g2, b2, m2, v2 = make_bn(C2c, ks[12], ks[13], ks[14], ks[15])
    out2 = jax.block_until_ready(conv_bn_silu(x, w2, g2, b2, m2, v2, stride=2))
    ref2 = conv_bn_silu_ref(x, w2, g2, b2, m2, v2, stride=2)
    assert out2.shape == (B, C2c, H // 2, W // 2), out2.shape
    assert out2.dtype == x.dtype
    assert jnp.allclose(out2, ref2, atol=1e-4, rtol=1e-4), \
        float(jnp.max(jnp.abs(out2 - ref2)))

    print("KERNEL_OK")
</pallas_src>

<mosaic_0001>
module attributes {stable_mosaic.version = 11 : i64} {
  func.func @_conv_bn_act_kernel(%arg0: i32, %arg1: i32, %arg2: memref<1x4x16x16xf32, #tpu.memory_space<vmem>>, %arg3: memref<8x36xf32, #tpu.memory_space<vmem>>, %arg4: memref<8x2xf32, #tpu.memory_space<vmem>>, %arg5: memref<1x8x8x16xf32, #tpu.memory_space<vmem>>, %arg6: memref<4x10x18xf32, #tpu.memory_space<vmem>>) attributes {dimension_semantics = [#tpu.dimension_semantics<parallel>, #tpu.dimension_semantics<parallel>], iteration_bounds = array<i64: 2, 2>, scalar_prefetch = 0 : i64, scratch_operands = 1 : i64, tpu.core_type = #tpu.core_type<tc>, window_params = [{transform_indices = @transform_0, window_bounds = array<i64: 1, 4, 16, 16>}, {pipeline_mode = #tpu.pipeline_mode<synchronous>, transform_indices = @transform_1, window_bounds = array<i64: 8, 36>}, {pipeline_mode = #tpu.pipeline_mode<synchronous>, transform_indices = @transform_2, window_bounds = array<i64: 8, 2>}, {transform_indices = @transform_3, window_bounds = array<i64: 1, 8, 8, 16>}]} {
    %c8_i32 = arith.constant 8 : i32
    %0 = arith.muli %arg1, %c8_i32 : i32
    %1 = tpu.assume_multiple %0, 8 : i32
    %c1_i32 = arith.constant 1 : i32
    %2 = arith.subi %1, %c1_i32 : i32
    %cst = arith.constant 0.000000e+00 : f32
    %3 = vector.broadcast %cst : f32 to vector<4x10x18xf32>
    %c0 = arith.constant 0 : index
    %c0_0 = arith.constant 0 : index
    %c0_1 = arith.constant 0 : index
    %4 = vector.load %arg6[%c0, %c0_0, %c0_1] : memref<4x10x18xf32, #tpu.memory_space<vmem>>, vector<4x10x18xf32>
    tpu.vector_store %arg6[%c0, %c0_0, %c0_1], %3 {strides = array<i32>} : memref<4x10x18xf32, #tpu.memory_space<vmem>>, vector<4x10x18xf32>,
    %c0_i32 = arith.constant 0 : i32
    %c10_i32 = arith.constant 10 : i32
    %5 = arith.addi %c0_i32, %c10_i32 : i32
    %c1_i32_2 = arith.constant 1 : i32
    scf.for %arg7 = %c0_i32 to %5 step %c1_i32_2  : i32 {
      %7 = arith.addi %2, %arg7 : i32
      %c0_i32_8 = arith.constant 0 : i32
      %8 = arith.cmpi sge, %7, %c0_i32_8 : i32
      %c16_i32 = arith.constant 16 : i32
      %9 = arith.cmpi slt, %7, %c16_i32 : i32
      %10 = arith.andi %8, %9 : i1
      %11 = arith.extui %10 : i1 to i32
      %c0_i32_9 = arith.constant 0 : i32
      %12 = arith.cmpi ne, %11, %c0_i32_9 : i32
      scf.if %12 {
        %c0_10 = arith.constant 0 : index
        %c0_11 = arith.constant 0 : index
        %13 = arith.index_cast %7 : i32 to index
        %c0_12 = arith.constant 0 : index
        %14 = vector.load %arg2[%c0_10, %c0_11, %13, %c0_12] : memref<1x4x16x16xf32, #tpu.memory_space<vmem>>, vector<1x4x1x16xf32>
        %15 = vector.shape_cast %14 : vector<1x4x1x16xf32> to vector<4x1x16xf32>
        %c0_13 = arith.constant 0 : index
        %16 = arith.index_cast %arg7 : i32 to index
        %c1 = arith.constant 1 : index
        %17 = vector.load %arg6[%c0_13, %16, %c1] : memref<4x10x18xf32, #tpu.memory_space<vmem>>, vector<4x1x16xf32>
        tpu.vector_store %arg6[%c0_13, %16, %c1], %15 {strides = array<i32>} : memref<4x10x18xf32, #tpu.memory_space<vmem>>, vector<4x1x16xf32>,
      } else {
      }
    }
    %c10_i32_3 = arith.constant 10 : i32
    %c0_i32_4 = arith.constant 0 : i32
    %c8_i32_5 = arith.constant 8 : i32
    %6 = arith.addi %c0_i32_4, %c8_i32_5 : i32
    %c1_i32_6 = arith.constant 1 : i32
    scf.for %arg7 = %c0_i32_4 to %6 step %c1_i32_6  : i32 {
      %c1_i32_8 = arith.constant 1 : i32
      %7 = arith.muli %arg7, %c1_i32_8 : i32
      %c0_i32_9 = arith.constant 0 : i32
      %8 = arith.addi %7, %c0_i32_9 : i32
      %c0_10 = arith.constant 0 : index
      %9 = arith.index_cast %8 : i32 to index
      %c0_11 = arith.constant 0 : index
      %10 = vector.load %arg6[%c0_10, %9, %c0_11] : memref<4x10x18xf32, #tpu.memory_space<vmem>>, vector<4x1x18xf32>
      %11 = vector.shape_cast %10 : vector<4x1x18xf32> to vector<4x18xf32>
      %12 = vector.extract_strided_slice %11 {offsets = [0, 0], sizes = [4, 16], strides = [1, 1]} : vector<4x18xf32> to vector<4x16xf32>
      %13 = vector.extract_strided_slice %11 {offsets = [0, 1], sizes = [4, 16], strides = [1, 1]} : vector<4x18xf32> to vector<4x16xf32>
      %14 = vector.extract_strided_slice %11 {offsets = [0, 2], sizes = [4, 16], strides = [1, 1]} : vector<4x18xf32> to vector<4x16xf32>
      %c1_i32_12 = arith.constant 1 : i32
      %15 = arith.muli %arg7, %c1_i32_12 : i32
      %c1_i32_13 = arith.constant 1 : i32
      %16 = arith.addi %15, %c1_i32_13 : i32
      %c0_14 = arith.constant 0 : index
      %17 = arith.index_cast %16 : i32 to index
      %c0_15 = arith.constant 0 : index
      %18 = vector.load %arg6[%c0_14, %17, %c0_15] : memref<4x10x18xf32, #tpu.memory_space<vmem>>, vector<4x1x18xf32>
      %19 = vector.shape_cast %18 : vector<4x1x18xf32> to vector<4x18xf32>
      %20 = vector.extract_strided_slice %19 {offsets = [0, 0], sizes = [4, 16], strides = [1, 1]} : vector<4x18xf32> to vector<4x16xf32>
      %21 = vector.extract_strided_slice %19 {offsets = [0, 1], sizes = [4, 16], strides = [1, 1]} : vector<4x18xf32> to vector<4x16xf32>
      %22 = vector.extract_strided_slice %19 {offsets = [0, 2], sizes = [4, 16], strides = [1, 1]} : vector<4x18xf32> to vector<4x16xf32>
      %c1_i32_16 = arith.constant 1 : i32
      %23 = arith.muli %arg7, %c1_i32_16 : i32
      %c2_i32 = arith.constant 2 : i32
      %24 = arith.addi %23, %c2_i32 : i32
      %c0_17 = arith.constant 0 : index
      %25 = arith.index_cast %24 : i32 to index
      %c0_18 = arith.constant 0 : index
      %26 = vector.load %arg6[%c0_17, %25, %c0_18] : memref<4x10x18xf32, #tpu.memory_space<vmem>>, vector<4x1x18xf32>
      %27 = vector.shape_cast %26 : vector<4x1x18xf32> to vector<4x18xf32>
      %28 = vector.extract_strided_slice %27 {offsets = [0, 0], sizes = [4, 16], strides = [1, 1]} : vector<4x18xf32> to vector<4x16xf32>
      %29 = vector.extract_strided_slice %27 {offsets = [0, 1], sizes = [4, 16], strides = [1, 1]} : vector<4x18xf32> to vector<4x16xf32>
      %30 = vector.extract_strided_slice %27 {offsets = [0, 2], sizes = [4, 16], strides = [1, 1]} : vector<4x18xf32> to vector<4x16xf32>
      %31 = tpu.concatenate %12, %13, %14, %20, %21, %22, %28, %29, %30 in 0 : vector<4x16xf32>, vector<4x16xf32>, vector<4x16xf32>, vector<4x16xf32>, vector<4x16xf32>, vector<4x16xf32>, vector<4x16xf32>, vector<4x16xf32>, vector<4x16xf32> -> vector<36x16xf32>
      %c0_19 = arith.constant 0 : index
      %c0_20 = arith.constant 0 : index
      %32 = vector.load %arg3[%c0_19, %c0_20] : memref<8x36xf32, #tpu.memory_space<vmem>>, vector<8x36xf32>
      %cst_21 = arith.constant dense<0.000000e+00> : vector<8x16xf32>
      %33 = tpu.matmul %32, %31, %cst_21 {dimension_numbers = #tpu.dot_dimension_numbers<[1], [0], [0], [1], [0, 0, 1, 1], [], []>} : vector<8x36xf32>, vector<36x16xf32>, vector<8x16xf32> -> vector<8x16xf32>
      %c0_22 = arith.constant 0 : index
      %c0_23 = arith.constant 0 : index
      %34 = vector.load %arg4[%c0_22, %c0_23] : memref<8x2xf32, #tpu.memory_space<vmem>>, vector<8x1xf32>
      %35 = vector.broadcast %34 : vector<8x1xf32> to vector<8x16xf32>
      %36 = arith.mulf %33, %35 : vector<8x16xf32>
      %c0_24 = arith.constant 0 : index
      %c1 = arith.constant 1 : index
      %37 = vector.load %arg4[%c0_24, %c1] : memref<8x2xf32, #tpu.memory_space<vmem>>, vector<8x1xf32>
      %38 = vector.broadcast %37 : vector<8x1xf32> to vector<8x16xf32>
      %39 = arith.addf %36, %38 : vector<8x16xf32>
      %cst_25 = arith.constant 0.000000e+00 : f32
      %40 = vector.broadcast %cst_25 : f32 to vector<8x16xf32>
      %41 = arith.subf %40, %39 : vector<8x16xf32>
      %42 = math.exp %41 : vector<8x16xf32>
      %cst_26 = arith.constant 1.000000e+00 : f32
      %43 = vector.broadcast %cst_26 : f32 to vector<8x16xf32>
      %44 = arith.addf %43, %42 : vector<8x16xf32>
      %cst_27 = arith.constant 1.000000e+00 : f32
      %45 = vector.broadcast %cst_27 : f32 to vector<8x16xf32>
      %46 = arith.divf %45, %44 : vector<8x16xf32>
      %47 = arith.mulf %39, %46 : vector<8x16xf32>
      %48 = vector.shape_cast %47 : vector<8x16xf32> to vector<8x1x16xf32>
      %c0_28 = arith.constant 0 : index
      %c0_29 = arith.constant 0 : index
      %49 = arith.index_cast %arg7 : i32 to index
      %c0_30 = arith.constant 0 : index
      %50 = vector.load %arg5[%c0_28, %c0_29, %49, %c0_30] : memref<1x8x8x16xf32, #tpu.memory_space<vmem>>, vector<1x8x1x16xf32>
      %51 = vector.shape_cast %50 : vector<1x8x1x16xf32> to vector<8x1x16xf32>
      %52 = vector.shape_cast %48 : vector<8x1x16xf32> to vector<1x8x1x16xf32>
      tpu.vector_store %arg5[%c0_28, %c0_29, %49, %c0_30], %52 {strides = array<i32>} : memref<1x8x8x16xf32, #tpu.memory_space<vmem>>, vector<1x8x1x16xf32>,
    }
    %c8_i32_7 = arith.constant 8 : i32
    return
  }
  func.func @transform_0(%arg0: i32, %arg1: i32) -> (i32, i32, i32, i32) {
    %c0_i32 = arith.constant 0 : i32
    %c0_i32_0 = arith.constant 0 : i32
    %c0_i32_1 = arith.constant 0 : i32
    %c0_i32_2 = arith.constant 0 : i32
    return %arg0, %c0_i32, %c0_i32_0, %c0_i32_1 : i32, i32, i32, i32
  }
  func.func @transform_1(%arg0: i32, %arg1: i32) -> (i32, i32) {
    %c0_i32 = arith.constant 0 : i32
    %c0_i32_0 = arith.constant 0 : i32
    %c0_i32_1 = arith.constant 0 : i32
    return %c0_i32, %c0_i32_0 : i32, i32
  }
  func.func @transform_2(%arg0: i32, %arg1: i32) -> (i32, i32) {
    %c0_i32 = arith.constant 0 : i32
    %c0_i32_0 = arith.constant 0 : i32
    %c0_i32_1 = arith.constant 0 : i32
    return %c0_i32, %c0_i32_0 : i32, i32
  }
  func.func @transform_3(%arg0: i32, %arg1: i32) -> (i32, i32, i32, i32) {
    %c0_i32 = arith.constant 0 : i32
    %c0_i32_0 = arith.constant 0 : i32
    %c0_i32_1 = arith.constant 0 : i32
    return %arg0, %c0_i32, %arg1, %c0_i32_0 : i32, i32, i32, i32
  }
}

</mosaic_0001>

<llo_original>
// kernel: tpu_custom_call.1
$region0: #{tpu_custom_call.1}
  #allocation0 [shape = 'u32[]', space=smem, size = 0x4, offset = 0x4, fixed_abs, tag = 'smem constant byte address 0x4 - core index']
  #allocation1 [shape = 'u32[144,128]{1,0:T(1,128)}', space=vmem, size = 0x12000, scoped, tag = 'internal scratch']
  #allocation2 [shape = 'f32[4,10,18]{2,1,0:T(8,128)}', space=vmem, size = 0x8000, scoped, tag = 'scratch operand']
  %s0 = inlined_call_operand.hbm [shape: f32[2,4,16,16], index: 0, kind: input, shape index: {}]
  %s1 = inlined_call_operand.vmem [shape: f32[8,36], index: 1, kind: input, shape index: {}]
  %s2 = inlined_call_operand.vmem [shape: f32[8,2], index: 2, kind: input, shape index: {}]
  %s3 = inlined_call_operand.hbm [shape: f32[2,8,16,16], index: 3, kind: output, shape index: {}]
  %s4 = sld [smem:[#allocation0]]
  $region67: #{tpu_custom_call.1} parent=0
    _
  %s6 = ssub.s32 1, %s4
  %s7 = scalar_select 0, %s6, %s4
  $region1: #{tpu_custom_call.1} parent=0
    #allocation3 [shape = 'u8[65536]{0}', space=vmem, size = 0x10000, scoped, tag = 'input window, operand 0']
    #allocation4 [shape = 's32[2]{0}', space=sflag, size = 0x8, scoped, tag = 'scoped memory for tpu_custom_call.1']
    #allocation5 [shape = 's32[2]{0}', space=sflag, size = 0x8, scoped, tag = 'scoped memory for tpu_custom_call.1']
    #allocation6 [shape = 'u8[65536]{0}', space=vmem, size = 0x10000, scoped, tag = 'output window, operand 0']
    %8 = vsyncpa [#allocation4], 0
    %s9 = scalar_lea.sflag [#allocation4], 1
    %10 = vsyncpa %s9, 0
    %11 = vsyncpa [#allocation5], 0
    %s12 = scalar_lea.sflag [#allocation5], 1
    %13 = vsyncpa %s12, 0
    loop: start=0, step=1, limit=6
    $region2: #{tpu_custom_call.1} parent=1 // loop_pre_header
      _
    $region3: #{tpu_custom_call.1} parent=1 // loop_header
      %s15 = sphi 0, %s19
      %p16 = scmp.ge.s32.totalorder %s15, 6
      %s22 = sphi 0, %s34
      %s23 = sphi 0, %s30
      %s24 = sphi 0, %s22
      %s25 = sphi 0, %s23
      %s26 = sphi 0, %s24
      %s27 = sphi 0, %s25
      %s37 = sphi 0, %s39
      %s40 = sphi 0, %s37
      %s41 = sphi 0, %s40
      %s57 = sphi 0, %s41
      %s61 = sphi 0, %s61
      %s63 = sphi 0, %s61
      %s64 = sphi 0, %s63
      %s78 = sphi 0, %s64
      %s82 = sphi 0, %s82
      %s84 = sphi 0, %s82
      %s85 = sphi 0, %s84
      %s99 = sphi 0, %s85
      %s107 = sphi 0, %s109
      %s110 = sphi 0, %s107
      %s111 = sphi 0, %s110
      %s127 = sphi 0, %s111
    $region4: #{tpu_custom_call.1} parent=1 // loop_header_branch
      %18 = sbr.rel (%p16) target = $region8
    $region5: #{tpu_custom_call.1} parent=1 // loop_body
      %s20 = ssub.s32 %s15, 1
      %s21 = ssub.s32 %s15, 2
      %s28 = sadd.s32 1, %s23
      %p29 = scmp.ge.s32.totalorder %s28, 2
      %s30 = scalar_select %p29, 0, %s28
      %s31 = sadd.s32 1, %s22
      %s32 = scalar_select %p29, %s31, %s22
      %p33 = scmp.ge.s32.totalorder %s32, 2
      %s34 = scalar_select %p33, 0, %s32
      %s35 = ssub.s32 %s22, %s34
      %p36 = scmp.eq.s32.totalorder %s35, 0
      %s38 = sadd.s32 %s37, 1
      %s39 = scalar_select %p36, %s37, %s38
      %p42 = pneg %p36
      %p43 = scmp.eq.s32.totalorder %s15, 3
      %p44 = por %p42, %p43
      %p45 = scmp.ne.s32.totalorder %s37, %s40
      %p46 = scmp.eq.s32.totalorder %s15, 0
      %p47 = por %p45, %p46
      %p48 = scmp.ne.s32.totalorder %s37, %s40
      %p49 = scmp.eq.s32.totalorder %s20, 3
      %p50 = por %p48, %p49
      %p51 = scmp.ne.s32.totalorder %s40, %s41
      %p52 = scmp.eq.s32.totalorder %s20, 0
      %p53 = por %p51, %p52
      %p54 = scmp.ne.s32.totalorder %s40, %s41
      %p55 = scmp.eq.s32.totalorder %s21, 3
      %p56 = por %p54, %p55
      %p58 = scmp.ne.s32.totalorder %s41, %s57
      %p59 = scmp.eq.s32.totalorder %s21, 0
      %p60 = por %p58, %p59
      %s62 = sadd.s32 %s61, 1
      %p65 = scmp.eq.s32.totalorder %s15, 3
      %p66 = scmp.ne.s32.totalorder %s61, %s63
      %p67 = scmp.eq.s32.totalorder %s15, 0
      %p68 = por %p66, %p67
      %p69 = scmp.ne.s32.totalorder %s61, %s63
      %p70 = scmp.eq.s32.totalorder %s20, 3
      %p71 = por %p69, %p70
      %p72 = scmp.ne.s32.totalorder %s63, %s64
      %p73 = scmp.eq.s32.totalorder %s20, 0
      %p74 = por %p72, %p73
      %p75 = scmp.ne.s32.totalorder %s63, %s64
      %p76 = scmp.eq.s32.totalorder %s21, 3
      %p77 = por %p75, %p76
      %p79 = scmp.ne.s32.totalorder %s64, %s78
      %p80 = scmp.eq.s32.totalorder %s21, 0
      %p81 = por %p79, %p80
      %s83 = sadd.s32 %s82, 1
      %p86 = scmp.eq.s32.totalorder %s15, 3
      %p87 = scmp.ne.s32.totalorder %s82, %s84
      %p88 = scmp.eq.s32.totalorder %s15, 0
      %p89 = por %p87, %p88
      %p90 = scmp.ne.s32.totalorder %s82, %s84
      %p91 = scmp.eq.s32.totalorder %s20, 3
      %p92 = por %p90, %p91
      %p93 = scmp.ne.s32.totalorder %s84, %s85
      %p94 = scmp.eq.s32.totalorder %s20, 0
      %p95 = por %p93, %p94
      %p96 = scmp.ne.s32.totalorder %s84, %s85
      %p97 = scmp.eq.s32.totalorder %s21, 3
      %p98 = por %p96, %p97
      %p100 = scmp.ne.s32.totalorder %s85, %s99
      %p101 = scmp.eq.s32.totalorder %s21, 0
      %p102 = por %p100, %p101
      %s103 = ssub.s32 %s22, %s34
      %s104 = ssub.s32 %s23, %s30
      %s105 = sor.u32 %s103, %s104
      %p106 = scmp.eq.s32.totalorder %s105, 0
      %s108 = sadd.s32 %s107, 1
      %s109 = scalar_select %p106, %s107, %s108
      %p112 = pneg %p106
      %p113 = scmp.eq.s32.totalorder %s15, 3
      %p114 = por %p112, %p113
      %p115 = scmp.ne.s32.totalorder %s107, %s110
      %p116 = scmp.eq.s32.totalorder %s15, 0
      %p117 = por %p115, %p116
      %p118 = scmp.ne.s32.totalorder %s107, %s110
      %p119 = scmp.eq.s32.totalorder %s20, 3
      %p120 = por %p118, %p119
      %p121 = scmp.ne.s32.totalorder %s110, %s111
      %p122 = scmp.eq.s32.totalorder %s20, 0
      %p123 = por %p121, %p122
      %p124 = scmp.ne.s32.totalorder %s110, %s111
      %p125 = scmp.eq.s32.totalorder %s21, 3
      %p126 = por %p124, %p125
      %p128 = scmp.ne.s32.totalorder %s111, %s127
      %p129 = scmp.eq.s32.totalorder %s21, 0
      %p130 = por %p128, %p129
      %p131 = scmp.le.s32.totalorder 1, %s15
      %p132 = scmp.lt.s32.totalorder %s15, 5
      %p133 = pnand %p131, %p132
      %p134 = pneg %p133
      // Predicated region
      $region9: #{tpu_custom_call.1} parent=5 // pred_check
        _
      $region10: #{tpu_custom_call.1} parent=5 // pred_check_branch
        %136 = sbr.rel (%p133) target = $region12
      $region11: #{tpu_custom_call.1} parent=5 // pred_region
        %s137 = ssub.s32 %s15, 1
        // Predicated region
        $region13: #{tpu_custom_call.1} parent=11 // pred_check
          %p138 = pneg %p74
        $region14: #{tpu_custom_call.1} parent=11 // pred_check_branch
          %140 = sbr.rel (%p138) target = $region16
        $region15: #{tpu_custom_call.1} parent=11 // pred_region
          _
        $region16: #{tpu_custom_call.1} parent=11 // pred_fallthru
          _
        // Predicated region
        $region17: #{tpu_custom_call.1} parent=11 // pred_check
          %p141 = pneg %p95
        $region18: #{tpu_custom_call.1} parent=11 // pred_check_branch
          %143 = sbr.rel (%p141) target = $region20
        $region19: #{tpu_custom_call.1} parent=11 // pred_region
          _
        $region20: #{tpu_custom_call.1} parent=11 // pred_fallthru
          _
      $region12: #{tpu_custom_call.1} parent=5 // pred_fallthru
        _
      %p144 = scmp.lt.s32.totalorder %s15, 4
      // Predicated region
      $region21: #{tpu_custom_call.1} parent=5 // pred_check
        %p145 = pneg %p144
      $region22: #{tpu_custom_call.1} parent=5 // pred_check_branch
        %147 = sbr.rel (%p145) target = $region24
      $region23: #{tpu_custom_call.1} parent=5 // pred_region
        // Predicated region
        $region25: #{tpu_custom_call.1} parent=23 // pred_check
          %p148 = pneg %p47
        $region26: #{tpu_custom_call.1} parent=23 // pred_check_branch
          %150 = sbr.rel (%p148) target = $region28
        $region27: #{tpu_custom_call.1} parent=23 // pred_region
          %s151 = sand.u32 %s37, 1
          %s152 = scalar_lea.sflag [#allocation4], %s151
          %s153 = sand.u32 %s37, 1
          %s154 = smul.addr %s153, 64
          %s155 = scalar_lea.vmem [#allocation3], %s154
          %s157 = ssub.s32 1024, 1024
          %158 = vsyncadd %s152, %s157
          %s159 = smul.addr %s22, 8
          %s160 = smul.addr %s159, 128
          %s161 = scalar_lea.hbm %s0, %s160
          %s162 = sshll.u32 %s155, 4
          %s163 = int_to_ptr.vmem [resolvable:$true] %s162
          %168 = dma.hbm_to_vmem [thread:$0]  %s161, 1024, %s163, %s152, 128, 128, 8
        $region28: #{tpu_custom_call.1} parent=23 // pred_fallthru
          _
      $region24: #{tpu_custom_call.1} parent=5 // pred_fallthru
        _
      %p169 = scmp.le.s32.totalorder 1, %s15
      %p170 = scmp.lt.s32.totalorder %s15, 5
      %p171 = pnand %p169, %p170
      %p172 = pneg %p171
      // Predicated region
      $region29: #{tpu_custom_call.1} parent=5 // pred_check
        _
      $region30: #{tpu_custom_call.1} parent=5 // pred_check_branch
        %174 = sbr.rel (%p171) target = $region32
      $region31: #{tpu_custom_call.1} parent=5 // pred_region
        %s175 = ssub.s32 %s15, 1
        %s176 = sand.u32 %s40, 1
        %s177 = scalar_lea.sflag [#allocation4], %s176
        %s178 = sand.u32 %s40, 1
        %s179 = smul.addr %s178, 64
        %s180 = scalar_lea.vmem [#allocation3], %s179
        // Predicated region
        $region33: #{tpu_custom_call.1} parent=31 // pred_check
          %p181 = pneg %p53
        $region34: #{tpu_custom_call.1} parent=31 // pred_check_branch
          %183 = sbr.rel (%p181) target = $region36
        $region35: #{tpu_custom_call.1} parent=31 // pred_region
          %184 = dma.done %s177, 1024
        $region36: #{tpu_custom_call.1} parent=31 // pred_fallthru
          _
        %s185 = sand.u32 %s40, 1
        %s186 = scalar_lea.sflag [#allocation4], %s185
        %s187 = sand.u32 %s40, 1
        %s188 = smul.addr %s187, 64
        %s189 = scalar_lea.vmem [#allocation3], %s188
        %p190 = pneg %p53
        %p191 = pneg %p50
        %p192 = pneg %p74
        %p193 = pneg %p71
        %p194 = pneg %p95
        %p195 = pneg %p92
        %p196 = pneg %p123
        %p197 = pneg %p120
        %s198 = sand.u32 %s110, 1
        %s199 = scalar_lea.sflag [#allocation5], %s198
        %s200 = sand.u32 %s110, 1
        %s201 = smul.addr %s200, 64
        %s202 = scalar_lea.vmem [#allocation6], %s201
        %s203 = smul.u32 %s25, 8
        %s204 = ssub.s32 %s203, 1
        %vm205 = vcmask 146432
        %206 = vst.msk [vmem:[#allocation2] sm:$0xff] %vm205, 0.0
        %vm207 = vcmask 140288
        %208 = vst.msk [vmem:[#allocation2 + $0x8] sm:$0x3] %vm207, 0.0
        %209 = vst.msk [vmem:[#allocation2 + $0x10] sm:$0xff] %vm205, 0.0
        %210 = vst.msk [vmem:[#allocation2 + $0x18] sm:$0x3] %vm207, 0.0
        %211 = vst.msk [vmem:[#allocation2 + $0x20] sm:$0xff] %vm205, 0.0
        %212 = vst.msk [vmem:[#allocation2 + $0x28] sm:$0x3] %vm207, 0.0
        %213 = vst.msk [vmem:[#allocation2 + $0x30] sm:$0xff] %vm205, 0.0
        %214 = vst.msk [vmem:[#allocation2 + $0x38] sm:$0x3] %vm207, 0.0
        loop: start=0, step=1, limit=10
        $region37: #{tpu_custom_call.1} parent=31 // loop_pre_header
          _
        $region38: #{tpu_custom_call.1} parent=31 // loop_header
          %s216 = sphi 0, %s220
          %p217 = scmp.ge.s32.totalorder %s216, 10
        $region39: #{tpu_custom_call.1} parent=31 // loop_header_branch
          %219 = sbr.rel (%p217) target = $region43
        $region40: #{tpu_custom_call.1} parent=31 // loop_body
          %s221 = sadd.s32 %s204, %s216
          %p222 = scmp.ge.s32.totalorder %s221, 0
          %p223 = scmp.lt.s32.totalorder %s221, 16
          %p224 = pnand %p222, %p223
          %p225 = pneg %p224
          // Predicated region
          $region44: #{tpu_custom_call.1} parent=40 // pred_check
            _
          $region45: #{tpu_custom_call.1} parent=40 // pred_check_branch
            %227 = sbr.rel (%p224) target = $region47
          $region46: #{tpu_custom_call.1} parent=40 // pred_region
            %s228 = scalar_lea.vmem %s180, %s221 [#allocation3]
            %v229 = vld [vmem:[%s228] sm:$0x1]
            %v230 = vld [vmem:[%s228 + $0x10] sm:$0x1]
            %v231 = vld [vmem:[%s228 + $0x20] sm:$0x1]
            %v232 = vld [vmem:[%s228 + $0x30] sm:$0x1]
            %237 = vrot.lane.b32.xlu0 %v229, 1
            %v238 = vpop.permute.xlu0 %237
            %239 = vrot.lane.b32.xlu0 %v230, 1
            %v240 = vpop.permute.xlu0 %239
            %241 = vrot.lane.b32.xlu0 %v231, 1
            %v242 = vpop.permute.xlu0 %241
            %243 = vrot.lane.b32.xlu0 %v232, 1
            %v244 = vpop.permute.xlu0 %243
            %s249 = scalar_lea.vmem [#allocation2], %s216
            %vm250 = vcmask 131080
            %251 = vst.msk [vmem:[%s249] sm:$0x1] %vm250, %v238
            %252 = vst.msk [vmem:[%s249 + $0x10] sm:$0x1] %vm250, %v240
            %253 = vst.msk [vmem:[%s249 + $0x20] sm:$0x1] %vm250, %v242
            %254 = vst.msk [vmem:[%s249 + $0x30] sm:$0x1] %vm250, %v244
          $region47: #{tpu_custom_call.1} parent=40 // pred_fallthru
            _
        $region41: #{tpu_custom_call.1} parent=31 // loop_footer
          %s220 = sadd.s32 1, %s216
        $region42: #{tpu_custom_call.1} parent=31 // loop_footer_branch
          %215 = sbr.rel target = $region38
        $region43: #{tpu_custom_call.1} parent=31 // loop_exit
          _
        loop: start=0, step=1, limit=8
        $region48: #{tpu_custom_call.1} parent=31 // loop_pre_header
          _
        $region49: #{tpu_custom_call.1} parent=31 // loop_header
          %s256 = sphi 0, %s260
          %p257 = scmp.ge.s32.totalorder %s256, 8
        $region50: #{tpu_custom_call.1} parent=31 // loop_header_branch
          %259 = sbr.rel (%p257) target = $region54
        $region51: #{tpu_custom_call.1} parent=31 // loop_body
          %s261 = scalar_lea.vmem [#allocation2], %s256
          %v262 = vld [vmem:[%s261] sm:$0x1]
          %v263 = vld [vmem:[%s261 + $0x10] sm:$0x1]
          %v264 = vld [vmem:[%s261 + $0x20] sm:$0x1]
          %v265 = vld [vmem:[%s261 + $0x30] sm:$0x1]
          %s266 = sadd.s32 %s256, 1
          %s267 = scalar_lea.vmem [#allocation2], %s266
          %v268 = vld [vmem:[%s267] sm:$0x1]
          %v269 = vld [vmem:[%s267 + $0x10] sm:$0x1]
          %v270 = vld [vmem:[%s267 + $0x20] sm:$0x1]
          %v271 = vld [vmem:[%s267 + $0x30] sm:$0x1]
          %s272 = sadd.s32 %s256, 2
          %s273 = scalar_lea.vmem [#allocation2], %s272
          %v274 = vld [vmem:[%s273] sm:$0x1]
          %v275 = vld [vmem:[%s273 + $0x10] sm:$0x1]
          %v276 = vld [vmem:[%s273 + $0x20] sm:$0x1]
          %v277 = vld [vmem:[%s273 + $0x30] sm:$0x1]
          %v282 = vrot.slane %v263, 7
          %vm283 = vcmask 1041409
          %v284 = vsel %vm283, %v282, %v262
          %v285 = vrot.slane %v264, 6
          %vm286 = vcmask 1042434
          %v287 = vsel %vm286, %v285, %v284
          %v288 = vrot.slane %v265, 5
          %vm289 = vcmask 1043459
          %v290 = vsel %vm289, %v288, %v287
          %v292 = vrot.slane %v262, 4
          %v293 = vrot.slane %v263, 3
          %vm294 = vcmask 1045509
          %v295 = vsel %vm294, %v293, %v292
          %v296 = vrot.slane %v264, 2
          %vm297 = vcmask 1046534
          %v298 = vsel %vm297, %v296, %v295
          %v299 = vrot.slane %v265, 1
          %vm300 = vcmask 1047559
          %v301 = vsel %vm300, %v299, %v298
          %302 = vrot.lane.b32.xlu0 %v301, 127
          %v303 = vpop.permute.xlu0 %302
          %305 = vrot.lane.b32.xlu0 %v290, 126
          %v306 = vpop.permute.xlu0 %305
          %v312 = vrot.slane %v268, 4
          %v313 = vrot.slane %v269, 3
          %v314 = vsel %vm294, %v313, %v312
          %v315 = vrot.slane %v270, 2
          %v316 = vsel %vm297, %v315, %v314
          %v317 = vrot.slane %v271, 1
          %v318 = vsel %vm300, %v317, %v316
          %v320 = vrot.slane %v269, 7
          %v321 = vsel %vm283, %v320, %v268
          %v322 = vrot.slane %v270, 6
          %v323 = vsel %vm286, %v322, %v321
          %v324 = vrot.slane %v271, 5
          %v325 = vsel %vm289, %v324, %v323
          %326 = vrot.lane.b32.xlu0 %v325, 127
          %v327 = vpop.permute.xlu0 %326
          %329 = vrot.lane.b32.xlu0 %v318, 126
          %v330 = vpop.permute.xlu0 %329
          %v336 = vrot.slane %v275, 7
          %v337 = vsel %vm283, %v336, %v274
          %v338 = vrot.slane %v276, 6
          %v339 = vsel %vm286, %v338, %v337
          %v340 = vrot.slane %v277, 5
          %v341 = vsel %vm289, %v340, %v339
          %v343 = vrot.slane %v274, 4
          %v344 = vrot.slane %v275, 3
          %v345 = vsel %vm294, %v344, %v343
          %v346 = vrot.slane %v276, 2
          %v347 = vsel %vm297, %v346, %v345
          %v348 = vrot.slane %v277, 1
          %v349 = vsel %vm300, %v348, %v347
          %350 = vrot.lane.b32.xlu0 %v349, 127
          %v351 = vpop.permute.xlu0 %350
          %353 = vrot.lane.b32.xlu0 %v341, 126
          %v354 = vpop.permute.xlu0 %353
          %vm355 = vcmask 1043456
          %v356 = vsel %vm355, %v290, %v303
          %v357 = vsel %vm355, %v306, %v318
          %v358 = vsel %vm355, %v327, %v330
          %v359 = vsel %vm355, %v341, %v351
          %v360 = vld [vmem:[%s1] sm:$0xff]
          %vm361 = vcmask 293888
          %v363 = vsel %vm361, %v360, 0
          %v365 = vsel %vm355, %v354, 0
          %367 = vmatprep.subr.mxu0 0.0
          %368 = vmatpush1.msra.mxu0 0.0
          %369 = vmatprep.subr.mxu0 0.0
          %370 = vmatpush1.msra.mxu0 0.0
          %371 = vmatprep.subr.mxu0 0.0
          %372 = vmatpush1.msra.mxu0 0.0
          %373 = vmatprep.subr.mxu0 0.0
          %374 = vmatpush1.msra.mxu0 0.0
          %375 = vmatprep.subr.mxu0 0.0
          %376 = vmatpush1.msra.mxu0 0.0
          %377 = vmatprep.subr.mxu0 0.0
          %378 = vmatpush1.msra.mxu0 0.0
          %379 = vmatprep.subr.mxu0 0.0
          %380 = vmatpush1.msra.mxu0 0.0
          %381 = vmatprep.subr.mxu0 0.0
          %382 = vmatpush1.msra.mxu0 0.0
          %383 = vmatprep.subr.mxu0 0.0
          %384 = vmatpush1.msra.mxu0 0.0
          %385 = vmatprep.subr.mxu0 0.0
          %386 = vmatpush1.msra.mxu0 0.0
          %387 = vmatprep.subr.mxu0 0.0
          %388 = vmatpush1.msra.mxu0 0.0
          %389 = vmatprep.subr.mxu0 0.0
          %390 = vmatpush1.msra.mxu0 %v365
          %391 = vmatprep.subr.mxu0 0.0
          %392 = vmatpush1.msra.mxu0 %v359
          %393 = vmatprep.subr.mxu0 0.0
          %394 = vmatpush1.msra.mxu0 %v358
          %395 = vmatprep.subr.mxu0 0.0
          %396 = vmatpush1.msra.mxu0 %v357
          %397 = vmatprep.subr.mxu0 0.0
          %398 = vmatpush1.msra.mxu0 %v356
          %399 = vmatprep.subr.mxu0 0.0
          %400 = vmatpush2.msra.mxu0 0.0
          %401 = vmatprep.subr.mxu0 0.0
          %402 = vmatpush2.msra.mxu0 0.0
          %403 = vmatprep.subr.mxu0 0.0
          %404 = vmatpush2.msra.mxu0 0.0
          %405 = vmatprep.subr.mxu0 0.0
          %406 = vmatpush2.msra.mxu0 0.0
          %407 = vmatprep.subr.mxu0 0.0
          %408 = vmatpush2.msra.mxu0 0.0
          %409 = vmatprep.subr.mxu0 0.0
          %410 = vmatpush2.msra.mxu0 0.0
          %411 = vmatprep.subr.mxu0 0.0
          %412 = vmatpush2.msra.mxu0 0.0
          %413 = vmatprep.subr.mxu0 0.0
          %414 = vmatpush2.msra.mxu0 0.0
          %415 = vmatprep.subr.mxu0 0.0
          %416 = vmatpush2.msra.mxu0 0.0
          %417 = vmatprep.subr.mxu0 0.0
          %418 = vmatpush2.msra.mxu0 0.0
          %419 = vmatprep.subr.mxu0 0.0
          %420 = vmatpush2.msra.mxu0 0.0
          %421 = vmatprep.subr.mxu0 0.0
          %422 = vmatpush2.msra.mxu0 0.0
          %423 = vmatprep.subr.mxu0 0.0
          %424 = vmatpush2.msra.mxu0 0.0
          %425 = vmatprep.subr.mxu0 0.0
          %426 = vmatpush2.msra.mxu0 0.0
          %427 = vmatprep.subr.mxu0 0.0
          %428 = vmatpush2.msra.mxu0 0.0
          %429 = vmatprep.subr.mxu0 0.0
          %430 = vmatpush2.msra.mxu0 0.0
          %431 = vmatprep.mubr.f32.mxu0 0.0
          %432 = vmatmul.mubr.f32.gmra.mxu0 %v363
          %v433 = vpop.f32.mrf.mxu0
          %v434 = vadd.f32 0.0, %v433
          %v435 = vpop.f32.mrf.mxu0
          %436 = vdwg.mxu0
          %v437 = vld [vmem:[%s2] sm:$0xff]
          %439 = vset.pattern.permute.xlu0 0
          %440 = vperm.xlu0 %439, %v437
          %v441 = vpop.permute.xlu0 %440
          %v443 = vmul.f32 %v434, %v441
          %444 = vset.pattern.permute.xlu0 1
          %445 = vperm.xlu0 %444, %v437
          %v446 = vpop.permute.xlu0 %445
          %v448 = vadd.f32 %v443, %v446
          %v449 = vsub.f32 0.0, %v448
          %v450 = vmul.f32 %v449, 1.442695
          %v451 = vpow.pop %v450
          %v452 = vadd.f32 %v451, 1.0
          %v453 = vrcp.pop %v452
          %v454 = vmul.f32 1.0, %v453
          %v455 = vmul.f32 %v448, %v454
          %v457 = vcombine.high %v455, %v455
          %v459 = vunpack.c.l.s4 1966171168
          %v460 = vunpack.c.0.s8 %v459
          %v461 = vlaneseq
          %v462 = vshrl.u32 %v461, 7
          %v463 = vsub.s32 %v460, %v462
          %v464 = vrot.slane %v455, %v463
          %v466 = vunpack.c.l.s4 1966171168
          %v467 = vunpack.c.0.s8 %v466
          %v468 = vlaneseq
          %v469 = vshrl.u32 %v468, 7
          %v470 = vsub.s32 %v467, %v469
          %v471 = vrot.slane %v457, %v470
          %v472 = vcombine.high %v464, %v464
          %v473 = vcombine.high %v471, %v471
          %v475 = vunpack.c.l.s4 1966171168
          %v476 = vunpack.c.0.s8 %v475
          %v477 = vlaneseq
          %v478 = vshrl.u32 %v477, 7
          %v479 = vsub.s32 %v476, %v478
          %v480 = vrot.slane %v464, %v479
          %v482 = vunpack.c.l.s4 1966171168
          %v483 = vunpack.c.0.s8 %v482
          %v484 = vlaneseq
          %v485 = vshrl.u32 %v484, 7
          %v486 = vsub.s32 %v483, %v485
          %v487 = vrot.slane %v471, %v486
          %v489 = vunpack.c.l.s4 1966171168
          %v490 = vunpack.c.0.s8 %v489
          %v491 = vlaneseq
          %v492 = vshrl.u32 %v491, 7
          %v493 = vsub.s32 %v490, %v492
          %v494 = vrot.slane %v472, %v493
          %v496 = vunpack.c.l.s4 1966171168
          %v497 = vunpack.c.0.s8 %v496
          %v498 = vlaneseq
          %v499 = vshrl.u32 %v498, 7
          %v500 = vsub.s32 %v497, %v499
          %v501 = vrot.slane %v473, %v500
          %v502 = vcombine.high %v480, %v480
          %v503 = vcombine.high %v487, %v487
          %v504 = vcombine.high %v494, %v494
          %v505 = vcombine.high %v501, %v501
          %s514 = scalar_lea.vmem %s202, %s256 [#allocation6]
          %vm515 = vcmask 122880
          %516 = vst.msk [vmem:[%s514] sm:$0x1] %vm515, %v480
          %517 = vst.msk [vmem:[%s514 + $0x8] sm:$0x1] %vm515, %v494
          %518 = vst.msk [vmem:[%s514 + $0x10] sm:$0x1] %vm515, %v502
          %519 = vst.msk [vmem:[%s514 + $0x18] sm:$0x1] %vm515, %v504
          %520 = vst.msk [vmem:[%s514 + $0x20] sm:$0x1] %vm515, %v487
          %521 = vst.msk [vmem:[%s514 + $0x28] sm:$0x1] %vm515, %v501
          %522 = vst.msk [vmem:[%s514 + $0x30] sm:$0x1] %vm515, %v503
          %523 = vst.msk [vmem:[%s514 + $0x38] sm:$0x1] %vm515, %v505
        $region52: #{tpu_custom_call.1} parent=31 // loop_footer
          %s260 = sadd.s32 1, %s256
        $region53: #{tpu_custom_call.1} parent=31 // loop_footer_branch
          %255 = sbr.rel target = $region49
        $region54: #{tpu_custom_call.1} parent=31 // loop_exit
          _
        %s524 = sand.u32 %s110, 1
        %s525 = scalar_lea.sflag [#allocation5], %s524
        %s526 = sand.u32 %s110, 1
        %s527 = smul.addr %s526, 64
        %s528 = scalar_lea.vmem [#allocation6], %s527
        // Predicated region
        $region55: #{tpu_custom_call.1} parent=31 // pred_check
          %p529 = pneg %p120
        $region56: #{tpu_custom_call.1} parent=31 // pred_check_branch
          %531 = sbr.rel (%p529) target = $region58
        $region57: #{tpu_custom_call.1} parent=31 // pred_region
          %s533 = ssub.s32 1024, 1024
          %534 = vsyncadd %s525, %s533
          %s535 = smul.addr %s24, 16
          %s536 = sadd.s32 %s25, %s535
          %s537 = smul.addr %s536, 128
          %s538 = scalar_lea.hbm %s3, %s537
          %s539 = sshll.u32 %s528, 4
          %s540 = int_to_ptr.vmem [resolvable:$true] %s539
          %545 = dma.vmem_to_hbm [thread:$0]  %s540, 1024, %s538, %s525, 128, 256, 8
        $region58: #{tpu_custom_call.1} parent=31 // pred_fallthru
          _
      $region32: #{tpu_custom_call.1} parent=5 // pred_fallthru
        _
      %p546 = scmp.le.s32.totalorder 2, %s15
      // Predicated region
      $region59: #{tpu_custom_call.1} parent=5 // pred_check
        %p547 = pneg %p546
      $region60: #{tpu_custom_call.1} parent=5 // pred_check_branch
        %549 = sbr.rel (%p547) target = $region62
      $region61: #{tpu_custom_call.1} parent=5 // pred_region
        %s550 = ssub.s32 %s15, 2
        // Predicated region
        $region63: #{tpu_custom_call.1} parent=61 // pred_check
          %p551 = pneg %p126
        $region64: #{tpu_custom_call.1} parent=61 // pred_check_branch
          %553 = sbr.rel (%p551) target = $region66
        $region65: #{tpu_custom_call.1} parent=61 // pred_region
          %s554 = sand.u32 %s111, 1
          %s555 = scalar_lea.sflag [#allocation5], %s554
          %s556 = sand.u32 %s111, 1
          %s557 = smul.addr %s556, 64
          %s558 = scalar_lea.vmem [#allocation6], %s557
          %559 = dma.done %s555, 1024
        $region66: #{tpu_custom_call.1} parent=61 // pred_fallthru
          _
      $region62: #{tpu_custom_call.1} parent=5 // pred_fallthru
        _
    $region6: #{tpu_custom_call.1} parent=1 // loop_footer
      %s19 = sadd.s32 1, %s15
    $region7: #{tpu_custom_call.1} parent=1 // loop_footer_branch
      %14 = sbr.rel target = $region3
    $region8: #{tpu_custom_call.1} parent=1 // loop_exit
      _
    %560 = vsyncpa [#allocation4], 1
    %s561 = scalar_lea.sflag [#allocation4], 1
    %562 = vsyncpa %s561, 1
    %563 = vsyncpa [#allocation5], 1
    %s564 = scalar_lea.sflag [#allocation5], 1
    %565 = vsyncpa %s564, 1

</llo_original>
